<compile_context>
chip_gen: v5e
topology: v5e:2x2
jax: 0.10.0
libtpu: 0.0.40
codegen_flags: <defaults>
</compile_context>

<pallas_src>
import functools

import jax
import jax.numpy as jnp
from jax.experimental import pallas as pl
from jax.experimental.pallas import tpu as pltpu


def _round_up(x, m):
    return pl.cdiv(x, m) * m


def encoder_kernel(x_ref, w1_ref, b1_ref, w2_ref, b2_ref, wh_ref, bh_ref, out_ref):
    # x arrives f32; cast to bf16 in-kernel so the MXU runs bf16 with f32 acc.
    x = x_ref[...].astype(jnp.bfloat16)
    # layer 1
    h = jnp.dot(x, w1_ref[...], preferred_element_type=jnp.float32) + b1_ref[...]
    # layer 2
    h = jnp.dot(h.astype(jnp.bfloat16), w2_ref[...],
                preferred_element_type=jnp.float32) + b2_ref[...]
    # ReLU (f32 elementwise)
    h = jnp.maximum(h, 0.0)
    # fused mu/sigma heads -> lane-dense padded output slab
    out = jnp.dot(h.astype(jnp.bfloat16), wh_ref[...],
                  preferred_element_type=jnp.float32) + bh_ref[...]
    out_ref[...] = out.astype(out_ref.dtype)


def prepare_params(params):
    """One-time weight preparation (run ONCE, outside the forward path).

    - Fuses the mu/sigma heads: W_head = [Wmu | Wsig], b_head likewise.
    - Zero-pads the hidden dim and the head output to multiples of 128 lanes
      (zero padding is exact: padded hidden columns stay 0 through both
      layers and contribute nothing to the heads).
    - Casts matmul weights to bf16 (biases stay f32; added post-matmul).
    """
    C_in, H = params["w1"].shape
    P = params["wmu"].shape[1]
    H_pad = max(128, _round_up(H, 128))
    n_head = 2 * P
    n_pad = max(128, _round_up(n_head, 128))

    w1 = jnp.pad(params["w1"], ((0, 0), (0, H_pad - H))).astype(jnp.bfloat16)
    b1 = jnp.pad(params["b1"], ((0, 0), (0, H_pad - H)))
    w2 = jnp.pad(params["w2"], ((0, H_pad - H), (0, H_pad - H))).astype(jnp.bfloat16)
    b2 = jnp.pad(params["b2"], ((0, 0), (0, H_pad - H)))
    wh = jnp.concatenate([params["wmu"], params["wsig"]], axis=1)        # (H, 2P)
    wh = jnp.pad(wh, ((0, H_pad - H), (0, n_pad - n_head))).astype(jnp.bfloat16)
    bh = jnp.concatenate([params["bmu"], params["bsig"]], axis=1)        # (1, 2P)
    bh = jnp.pad(bh, ((0, 0), (0, n_pad - n_head)))
    return {"w1": w1, "b1": b1, "w2": w2, "b2": b2, "wh": wh, "bh": bh}


@functools.partial(
    jax.jit,
    static_argnames=("prob_dim", "block_b", "single_buffer_weights", "out_dtype"))
def encoder_forward(x, prepared, *, prob_dim, block_b=512,
                    single_buffer_weights=True, out_dtype=jnp.float32):
    """x: (B, C_in) float32; prepared: output of prepare_params().

    Returns (mu, sigma), each (B, prob_dim) float32.
    """
    B, C_in = x.shape
    H_pad = prepared["w1"].shape[1]
    n_pad = prepared["wh"].shape[1]

    # ---- Row tile: single block for small batches, up to block_b otherwise --
    tb = int(min(block_b, _round_up(B, 8)))
    B_pad = int(_round_up(B, tb))
    if B_pad != B:
        x = jnp.pad(x, ((0, B_pad - B), (0, 0)))     # stays f32
    n_blocks = B_pad // tb

    # ---- VMEM budget: single-buffered weights + pipelined act/out tiles -----
    out_size = jnp.dtype(out_dtype).itemsize
    wrep = 1 if single_buffer_weights else 2
    weight_bytes = (C_in * H_pad + H_pad * H_pad + H_pad * n_pad) * 2     # bf16
    bias_bytes = (2 * H_pad + n_pad) * 4                                  # f32
    need = wrep * (weight_bytes + bias_bytes)
    need += 2 * tb * C_in * 4            # double-buffered f32 activation tile
    need += 2 * tb * n_pad * out_size    # double-buffered output tile
    need += 2 * tb * H_pad * 4           # live f32 intermediate h (spill headroom)
    vmem_limit = max(16 << 20, min(int(need * 1.25) + (4 << 20), 96 << 20))

    resident_kwargs = (
        {"pipeline_mode": pl.Buffered(1)} if single_buffer_weights else {})

    def resident(shape):
        # Constant index_map -> block stays in VMEM across the whole grid.
        return pl.BlockSpec(shape, lambda i: (0,) * len(shape), **resident_kwargs)

    out_full = pl.pallas_call(
        encoder_kernel,
        out_shape=jax.ShapeDtypeStruct((B_pad, n_pad), out_dtype),
        grid=(n_blocks,),
        in_specs=[
            pl.BlockSpec((tb, C_in), lambda i: (i, 0)),   # activation stream (f32)
            resident((C_in, H_pad)),                      # W1 (resident, bf16)
            resident((1, H_pad)),                         # b1
            resident((H_pad, H_pad)),                     # W2
            resident((1, H_pad)),                         # b2
            resident((H_pad, n_pad)),                     # fused/padded head W
            resident((1, n_pad)),                         # fused/padded head b
        ],
        out_specs=pl.BlockSpec((tb, n_pad), lambda i: (i, 0)),
        compiler_params=pltpu.CompilerParams(
            dimension_semantics=("parallel",),
            vmem_limit_bytes=vmem_limit,
        ),
    )(x, prepared["w1"], prepared["b1"], prepared["w2"], prepared["b2"],
      prepared["wh"], prepared["bh"])

    out = out_full[:B]
    mu = out[:, :prob_dim].astype(jnp.float32)
    sigma = out[:, prob_dim:2 * prob_dim].astype(jnp.float32)
    return mu, sigma


def init_params(key, input_channels, hidden_dim, prob_dim):
    """Deterministic init mimicking nn.Linear's uniform(-1/sqrt(fan_in), ...).
    Weights are stored transposed: (in_features, out_features)."""
    def linear_init(k, fan_in, fan_out):
        kw, kb = jax.random.split(k)
        bound = 1.0 / jnp.sqrt(fan_in)
        w = jax.random.uniform(kw, (fan_in, fan_out), jnp.float32, -bound, bound)
        b = jax.random.uniform(kb, (1, fan_out), jnp.float32, -bound, bound)
        return w, b

    k1, k2, k3, k4 = jax.random.split(key, 4)
    w1, b1 = linear_init(k1, input_channels, hidden_dim)
    w2, b2 = linear_init(k2, hidden_dim, hidden_dim)
    wmu, bmu = linear_init(k3, hidden_dim, prob_dim)
    wsig, bsig = linear_init(k4, hidden_dim, prob_dim)
    return {"w1": w1, "b1": b1, "w2": w2, "b2": b2,
            "wmu": wmu, "bmu": bmu, "wsig": wsig, "bsig": bsig}


def reference_forward(x, p):
    """Pure-JAX f32 reference (matches the PyTorch module)."""
    h = x @ p["w1"] + p["b1"]
    h = h @ p["w2"] + p["b2"]
    h = jnp.maximum(h, 0.0)
    mu = h @ p["wmu"] + p["bmu"]
    sigma = h @ p["wsig"] + p["bsig"]
    return mu, sigma


if __name__ == "__main__":
    key = jax.random.PRNGKey(0)
    k_x, k_p = jax.random.split(key)

    batch = 16
    input_channels = 16
    hidden_dim = 32
    prob_dim = 8

    x = jax.random.normal(k_x, (batch, input_channels), jnp.float32)
    params = init_params(k_p, input_channels, hidden_dim, prob_dim)
    prepared = jax.block_until_ready(prepare_params(params))   # one-time prep

    try:
        mu, sigma = encoder_forward(x, prepared, prob_dim=prob_dim)
        jax.block_until_ready((mu, sigma))
    except Exception:
        # Fallback for JAX versions where pipeline_mode=pl.Buffered(1) is not
        # accepted on pallas_call BlockSpecs: use default double-buffering.
        mu, sigma = encoder_forward(x, prepared, prob_dim=prob_dim,
                                    single_buffer_weights=False)
        jax.block_until_ready((mu, sigma))

    # Correctness check against pure-JAX f32 reference (bf16 matmul operands
    # loosen tolerance to ~1e-2 relative).
    mu_ref, sigma_ref = reference_forward(x, params)
    assert mu.shape == mu_ref.shape and sigma.shape == sigma_ref.shape
    assert jnp.allclose(mu, mu_ref, atol=5e-2, rtol=5e-2), "mu mismatch"
    assert jnp.allclose(sigma, sigma_ref, atol=5e-2, rtol=5e-2), "sigma mismatch"

    print("KERNEL_OK")
</pallas_src>

<mosaic_0001>
module attributes {stable_mosaic.version = 11 : i64} {
  func.func @encoder_kernel(%arg0: i32, %arg1: memref<16x16xf32, #tpu.memory_space<vmem>>, %arg2: memref<16x128xbf16, #tpu.memory_space<vmem>>, %arg3: memref<1x128xf32, #tpu.memory_space<vmem>>, %arg4: memref<128x128xbf16, #tpu.memory_space<vmem>>, %arg5: memref<1x128xf32, #tpu.memory_space<vmem>>, %arg6: memref<128x128xbf16, #tpu.memory_space<vmem>>, %arg7: memref<1x128xf32, #tpu.memory_space<vmem>>, %arg8: memref<16x128xf32, #tpu.memory_space<vmem>>) attributes {dimension_semantics = [#tpu.dimension_semantics<parallel>], iteration_bounds = array<i64: 1>, scalar_prefetch = 0 : i64, scratch_operands = 0 : i64, tpu.core_type = #tpu.core_type<tc>, window_params = [{transform_indices = @transform_0, window_bounds = array<i64: 16, 16>}, {pipeline_mode = #tpu.pipeline_mode<synchronous>, transform_indices = @transform_1, window_bounds = array<i64: 16, 128>}, {pipeline_mode = #tpu.pipeline_mode<synchronous>, transform_indices = @transform_2, window_bounds = array<i64: 1, 128>}, {pipeline_mode = #tpu.pipeline_mode<synchronous>, transform_indices = @transform_3, window_bounds = array<i64: 128, 128>}, {pipeline_mode = #tpu.pipeline_mode<synchronous>, transform_indices = @transform_4, window_bounds = array<i64: 1, 128>}, {pipeline_mode = #tpu.pipeline_mode<synchronous>, transform_indices = @transform_5, window_bounds = array<i64: 128, 128>}, {pipeline_mode = #tpu.pipeline_mode<synchronous>, transform_indices = @transform_6, window_bounds = array<i64: 1, 128>}, {transform_indices = @transform_7, window_bounds = array<i64: 16, 128>}]} {
    %c0 = arith.constant 0 : index
    %c0_0 = arith.constant 0 : index
    %0 = vector.load %arg1[%c0, %c0_0] : memref<16x16xf32, #tpu.memory_space<vmem>>, vector<16x16xf32>
    %1 = arith.truncf %0 : vector<16x16xf32> to vector<16x16xbf16>
    %c0_1 = arith.constant 0 : index
    %c0_2 = arith.constant 0 : index
    %2 = vector.load %arg2[%c0_1, %c0_2] : memref<16x128xbf16, #tpu.memory_space<vmem>>, vector<16x128xbf16>
    %cst = arith.constant dense<0.000000e+00> : vector<16x128xf32>
    %3 = tpu.matmul %1, %2, %cst {dimension_numbers = #tpu.dot_dimension_numbers<[1], [0], [0], [1], [0, 0, 1, 1], [], []>} : vector<16x16xbf16>, vector<16x128xbf16>, vector<16x128xf32> -> vector<16x128xf32>
    %c0_3 = arith.constant 0 : index
    %c0_4 = arith.constant 0 : index
    %4 = vector.load %arg3[%c0_3, %c0_4] : memref<1x128xf32, #tpu.memory_space<vmem>>, vector<1x128xf32>
    %5 = vector.broadcast %4 : vector<1x128xf32> to vector<16x128xf32>
    %6 = arith.addf %3, %5 : vector<16x128xf32>
    %7 = arith.truncf %6 : vector<16x128xf32> to vector<16x128xbf16>
    %c0_5 = arith.constant 0 : index
    %c0_6 = arith.constant 0 : index
    %8 = vector.load %arg4[%c0_5, %c0_6] : memref<128x128xbf16, #tpu.memory_space<vmem>>, vector<128x128xbf16>
    %cst_7 = arith.constant dense<0.000000e+00> : vector<16x128xf32>
    %9 = tpu.matmul %7, %8, %cst_7 {dimension_numbers = #tpu.dot_dimension_numbers<[1], [0], [0], [1], [0, 0, 1, 1], [], []>} : vector<16x128xbf16>, vector<128x128xbf16>, vector<16x128xf32> -> vector<16x128xf32>
    %c0_8 = arith.constant 0 : index
    %c0_9 = arith.constant 0 : index
    %10 = vector.load %arg5[%c0_8, %c0_9] : memref<1x128xf32, #tpu.memory_space<vmem>>, vector<1x128xf32>
    %11 = vector.broadcast %10 : vector<1x128xf32> to vector<16x128xf32>
    %12 = arith.addf %9, %11 : vector<16x128xf32>
    %cst_10 = arith.constant 0.000000e+00 : f32
    %13 = vector.broadcast %cst_10 : f32 to vector<16x128xf32>
    %14 = arith.maximumf %12, %13 : vector<16x128xf32>
    %15 = arith.truncf %14 : vector<16x128xf32> to vector<16x128xbf16>
    %c0_11 = arith.constant 0 : index
    %c0_12 = arith.constant 0 : index
    %16 = vector.load %arg6[%c0_11, %c0_12] : memref<128x128xbf16, #tpu.memory_space<vmem>>, vector<128x128xbf16>
    %cst_13 = arith.constant dense<0.000000e+00> : vector<16x128xf32>
    %17 = tpu.matmul %15, %16, %cst_13 {dimension_numbers = #tpu.dot_dimension_numbers<[1], [0], [0], [1], [0, 0, 1, 1], [], []>} : vector<16x128xbf16>, vector<128x128xbf16>, vector<16x128xf32> -> vector<16x128xf32>
    %c0_14 = arith.constant 0 : index
    %c0_15 = arith.constant 0 : index
    %18 = vector.load %arg7[%c0_14, %c0_15] : memref<1x128xf32, #tpu.memory_space<vmem>>, vector<1x128xf32>
    %19 = vector.broadcast %18 : vector<1x128xf32> to vector<16x128xf32>
    %20 = arith.addf %17, %19 : vector<16x128xf32>
    %c0_16 = arith.constant 0 : index
    %c0_17 = arith.constant 0 : index
    %21 = vector.load %arg8[%c0_16, %c0_17] : memref<16x128xf32, #tpu.memory_space<vmem>>, vector<16x128xf32>
    tpu.vector_store %arg8[%c0_16, %c0_17], %20 {strides = array<i32>} : memref<16x128xf32, #tpu.memory_space<vmem>>, vector<16x128xf32>,
    return
  }
  func.func @transform_0(%arg0: i32) -> (i32, i32) {
    %c0_i32 = arith.constant 0 : i32
    %c0_i32_0 = arith.constant 0 : i32
    return %arg0, %c0_i32 : i32, i32
  }
  func.func @transform_1(%arg0: i32) -> (i32, i32) {
    %c0_i32 = arith.constant 0 : i32
    %c0_i32_0 = arith.constant 0 : i32
    %c0_i32_1 = arith.constant 0 : i32
    return %c0_i32, %c0_i32_0 : i32, i32
  }
  func.func @transform_2(%arg0: i32) -> (i32, i32) {
    %c0_i32 = arith.constant 0 : i32
    %c0_i32_0 = arith.constant 0 : i32
    %c0_i32_1 = arith.constant 0 : i32
    return %c0_i32, %c0_i32_0 : i32, i32
  }
  func.func @transform_3(%arg0: i32) -> (i32, i32) {
    %c0_i32 = arith.constant 0 : i32
    %c0_i32_0 = arith.constant 0 : i32
    %c0_i32_1 = arith.constant 0 : i32
    return %c0_i32, %c0_i32_0 : i32, i32
  }
  func.func @transform_4(%arg0: i32) -> (i32, i32) {
    %c0_i32 = arith.constant 0 : i32
    %c0_i32_0 = arith.constant 0 : i32
    %c0_i32_1 = arith.constant 0 : i32
    return %c0_i32, %c0_i32_0 : i32, i32
  }
  func.func @transform_5(%arg0: i32) -> (i32, i32) {
    %c0_i32 = arith.constant 0 : i32
    %c0_i32_0 = arith.constant 0 : i32
    %c0_i32_1 = arith.constant 0 : i32
    return %c0_i32, %c0_i32_0 : i32, i32
  }
  func.func @transform_6(%arg0: i32) -> (i32, i32) {
    %c0_i32 = arith.constant 0 : i32
    %c0_i32_0 = arith.constant 0 : i32
    %c0_i32_1 = arith.constant 0 : i32
    return %c0_i32, %c0_i32_0 : i32, i32
  }
  func.func @transform_7(%arg0: i32) -> (i32, i32) {
    %c0_i32 = arith.constant 0 : i32
    %c0_i32_0 = arith.constant 0 : i32
    return %arg0, %c0_i32 : i32, i32
  }
}

module attributes {stable_mosaic.version = 11 : i64} {
  func.func @encoder_kernel(%arg0: i32, %arg1: memref<16x16xf32, #tpu.memory_space<vmem>>, %arg2: memref<16x128xbf16, #tpu.memory_space<vmem>>, %arg3: memref<1x128xf32, #tpu.memory_space<vmem>>, %arg4: memref<128x128xbf16, #tpu.memory_space<vmem>>, %arg5: memref<1x128xf32, #tpu.memory_space<vmem>>, %arg6: memref<128x128xbf16, #tpu.memory_space<vmem>>, %arg7: memref<1x128xf32, #tpu.memory_space<vmem>>, %arg8: memref<16x128xf32, #tpu.memory_space<vmem>>) attributes {dimension_semantics = [#tpu.dimension_semantics<parallel>], iteration_bounds = array<i64: 1>, scalar_prefetch = 0 : i64, scratch_operands = 0 : i64, tpu.core_type = #tpu.core_type<tc>, window_params = [{transform_indices = @transform_0, window_bounds = array<i64: 16, 16>}, {pipeline_mode = #tpu.pipeline_mode<synchronous>, transform_indices = @transform_1, window_bounds = array<i64: 16, 128>}, {pipeline_mode = #tpu.pipeline_mode<synchronous>, transform_indices = @transform_2, window_bounds = array<i64: 1, 128>}, {pipeline_mode = #tpu.pipeline_mode<synchronous>, transform_indices = @transform_3, window_bounds = array<i64: 128, 128>}, {pipeline_mode = #tpu.pipeline_mode<synchronous>, transform_indices = @transform_4, window_bounds = array<i64: 1, 128>}, {pipeline_mode = #tpu.pipeline_mode<synchronous>, transform_indices = @transform_5, window_bounds = array<i64: 128, 128>}, {pipeline_mode = #tpu.pipeline_mode<synchronous>, transform_indices = @transform_6, window_bounds = array<i64: 1, 128>}, {transform_indices = @transform_7, window_bounds = array<i64: 16, 128>}]} {
    %c0 = arith.constant 0 : index
    %c0_0 = arith.constant 0 : index
    %0 = vector.load %arg1[%c0, %c0_0] : memref<16x16xf32, #tpu.memory_space<vmem>>, vector<16x16xf32>
    %1 = arith.truncf %0 : vector<16x16xf32> to vector<16x16xbf16>
    %c0_1 = arith.constant 0 : index
    %c0_2 = arith.constant 0 : index
    %2 = vector.load %arg2[%c0_1, %c0_2] : memref<16x128xbf16, #tpu.memory_space<vmem>>, vector<16x128xbf16>
    %cst = arith.constant dense<0.000000e+00> : vector<16x128xf32>
    %3 = tpu.matmul %1, %2, %cst {dimension_numbers = #tpu.dot_dimension_numbers<[1], [0], [0], [1], [0, 0, 1, 1], [], []>} : vector<16x16xbf16>, vector<16x128xbf16>, vector<16x128xf32> -> vector<16x128xf32>
    %c0_3 = arith.constant 0 : index
    %c0_4 = arith.constant 0 : index
    %4 = vector.load %arg3[%c0_3, %c0_4] : memref<1x128xf32, #tpu.memory_space<vmem>>, vector<1x128xf32>
    %5 = vector.broadcast %4 : vector<1x128xf32> to vector<16x128xf32>
    %6 = arith.addf %3, %5 : vector<16x128xf32>
    %7 = arith.truncf %6 : vector<16x128xf32> to vector<16x128xbf16>
    %c0_5 = arith.constant 0 : index
    %c0_6 = arith.constant 0 : index
    %8 = vector.load %arg4[%c0_5, %c0_6] : memref<128x128xbf16, #tpu.memory_space<vmem>>, vector<128x128xbf16>
    %cst_7 = arith.constant dense<0.000000e+00> : vector<16x128xf32>
    %9 = tpu.matmul %7, %8, %cst_7 {dimension_numbers = #tpu.dot_dimension_numbers<[1], [0], [0], [1], [0, 0, 1, 1], [], []>} : vector<16x128xbf16>, vector<128x128xbf16>, vector<16x128xf32> -> vector<16x128xf32>
    %c0_8 = arith.constant 0 : index
    %c0_9 = arith.constant 0 : index
    %10 = vector.load %arg5[%c0_8, %c0_9] : memref<1x128xf32, #tpu.memory_space<vmem>>, vector<1x128xf32>
    %11 = vector.broadcast %10 : vector<1x128xf32> to vector<16x128xf32>
    %12 = arith.addf %9, %11 : vector<16x128xf32>
    %cst_10 = arith.constant 0.000000e+00 : f32
    %13 = vector.broadcast %cst_10 : f32 to vector<16x128xf32>
    %14 = arith.maximumf %12, %13 : vector<16x128xf32>
    %15 = arith.truncf %14 : vector<16x128xf32> to vector<16x128xbf16>
    %c0_11 = arith.constant 0 : index
    %c0_12 = arith.constant 0 : index
    %16 = vector.load %arg6[%c0_11, %c0_12] : memref<128x128xbf16, #tpu.memory_space<vmem>>, vector<128x128xbf16>
    %cst_13 = arith.constant dense<0.000000e+00> : vector<16x128xf32>
    %17 = tpu.matmul %15, %16, %cst_13 {dimension_numbers = #tpu.dot_dimension_numbers<[1], [0], [0], [1], [0, 0, 1, 1], [], []>} : vector<16x128xbf16>, vector<128x128xbf16>, vector<16x128xf32> -> vector<16x128xf32>
    %c0_14 = arith.constant 0 : index
    %c0_15 = arith.constant 0 : index
    %18 = vector.load %arg7[%c0_14, %c0_15] : memref<1x128xf32, #tpu.memory_space<vmem>>, vector<1x128xf32>
    %19 = vector.broadcast %18 : vector<1x128xf32> to vector<16x128xf32>
    %20 = arith.addf %17, %19 : vector<16x128xf32>
    %c0_16 = arith.constant 0 : index
    %c0_17 = arith.constant 0 : index
    %21 = vector.load %arg8[%c0_16, %c0_17] : memref<16x128xf32, #tpu.memory_space<vmem>>, vector<16x128xf32>
    tpu.vector_store %arg8[%c0_16, %c0_17], %20 {strides = array<i32>} : memref<16x128xf32, #tpu.memory_space<vmem>>, vector<16x128xf32>,
    return
  }
  func.func @transform_0(%arg0: i32) -> (i32, i32) {
    %c0_i32 = arith.constant 0 : i32
    %c0_i32_0 = arith.constant 0 : i32
    return %arg0, %c0_i32 : i32, i32
  }
  func.func @transform_1(%arg0: i32) -> (i32, i32) {
    %c0_i32 = arith.constant 0 : i32
    %c0_i32_0 = arith.constant 0 : i32
    %c0_i32_1 = arith.constant 0 : i32
    return %c0_i32, %c0_i32_0 : i32, i32
  }
  func.func @transform_2(%arg0: i32) -> (i32, i32) {
    %c0_i32 = arith.constant 0 : i32
    %c0_i32_0 = arith.constant 0 : i32
    %c0_i32_1 = arith.constant 0 : i32
    return %c0_i32, %c0_i32_0 : i32, i32
  }
  func.func @transform_3(%arg0: i32) -> (i32, i32) {
    %c0_i32 = arith.constant 0 : i32
    %c0_i32_0 = arith.constant 0 : i32
    %c0_i32_1 = arith.constant 0 : i32
    return %c0_i32, %c0_i32_0 : i32, i32
  }
  func.func @transform_4(%arg0: i32) -> (i32, i32) {
    %c0_i32 = arith.constant 0 : i32
    %c0_i32_0 = arith.constant 0 : i32
    %c0_i32_1 = arith.constant 0 : i32
    return %c0_i32, %c0_i32_0 : i32, i32
  }
  func.func @transform_5(%arg0: i32) -> (i32, i32) {
    %c0_i32 = arith.constant 0 : i32
    %c0_i32_0 = arith.constant 0 : i32
    %c0_i32_1 = arith.constant 0 : i32
    return %c0_i32, %c0_i32_0 : i32, i32
  }
  func.func @transform_6(%arg0: i32) -> (i32, i32) {
    %c0_i32 = arith.constant 0 : i32
    %c0_i32_0 = arith.constant 0 : i32
    %c0_i32_1 = arith.constant 0 : i32
    return %c0_i32, %c0_i32_0 : i32, i32
  }
  func.func @transform_7(%arg0: i32) -> (i32, i32) {
    %c0_i32 = arith.constant 0 : i32
    %c0_i32_0 = arith.constant 0 : i32
    return %arg0, %c0_i32 : i32, i32
  }
}

</mosaic_0001>

<llo_original>
// kernel: encoder_forward.1
$region0: #{encoder_forward.1}
  #allocation0 [shape = 'u32[]', space=smem, size = 0x4, offset = 0x4, fixed_abs, tag = 'smem constant byte address 0x4 - core index']
  #allocation1 [shape = 'u32[72,128]{1,0:T(1,128)}', space=vmem, size = 0x9000, scoped, tag = 'internal scratch']
  %s0 = inlined_call_operand.hbm [shape: f32[16,16], index: 0, kind: input, shape index: {}]
  %s1 = inlined_call_operand.hbm [shape: bf16[16,128], index: 1, kind: input, shape index: {}]
  %s2 = inlined_call_operand.hbm [shape: f32[1,128], index: 2, kind: input, shape index: {}]
  %s3 = inlined_call_operand.hbm [shape: bf16[128,128], index: 3, kind: input, shape index: {}]
  %s4 = inlined_call_operand.vmem [shape: f32[1,128], index: 4, kind: input, shape index: {}]
  %s5 = inlined_call_operand.hbm [shape: bf16[128,128], index: 5, kind: input, shape index: {}]
  %s6 = inlined_call_operand.vmem [shape: f32[1,128], index: 6, kind: input, shape index: {}]
  %s7 = inlined_call_operand.vmem [shape: f32[16,128], index: 7, kind: output, shape index: {}]
  %s8 = sld [smem:[#allocation0]]
  $region58: #{encoder_forward.1} parent=0
    _
  %s10 = ssub.s32 1, %s8
  %s11 = scalar_select 0, %s10, %s8
  $region1: #{encoder_forward.1} parent=0
    #allocation2 [shape = 'u8[8192]{0}', space=vmem, size = 0x2000, scoped, tag = 'input window, operand 0, single buffered']
    #allocation3 [shape = 's32[1]{0}', space=sflag, size = 0x4, scoped, tag = 'scoped memory for encoder_forward.1']
    #allocation4 [shape = 'u8[4096]{0}', space=vmem, size = 0x1000, scoped, tag = 'input window, operand 1, single buffered']
    #allocation5 [shape = 's32[1]{0}', space=sflag, size = 0x4, scoped, tag = 'scoped memory for encoder_forward.1']
    #allocation6 [shape = 'u8[512]{0}', space=vmem, size = 0x400, scoped, tag = 'input window, operand 2, single buffered']
    #allocation7 [shape = 'u8[32768]{0}', space=vmem, size = 0x8000, scoped, tag = 'input window, operand 3, single buffered']
    #allocation8 [shape = 's32[1]{0}', space=sflag, size = 0x4, scoped, tag = 'scoped memory for encoder_forward.1']
    #allocation9 [shape = 'u8[32768]{0}', space=vmem, size = 0x8000, scoped, tag = 'input window, operand 5, single buffered']
    %12 = vsyncpa [#allocation3], 0
    %13 = vsyncpa [#allocation5], 0
    %14 = vsyncpa [#allocation8], 0
    // Predicated region
    $region2: #{encoder_forward.1} parent=1 // pred_check
      _
    $region3: #{encoder_forward.1} parent=1 // pred_check_branch
      %16 = sbr.rel (0) target = $region5
    $region4: #{encoder_forward.1} parent=1 // pred_region
      %18 = vsyncadd [#allocation3], 0
      %s19 = sshll.u32 %s0, 4
      %s20 = int_to_ptr.hbm [resolvable:$true] %s19
      %s21 = sshll.u32 [#allocation2], 4
      %s22 = int_to_ptr.vmem [resolvable:$true] %s21
      %27 = dma.hbm_to_vmem [thread:$0]  %s20, 256, %s22, [#allocation3], 128, 128, 8
    $region5: #{encoder_forward.1} parent=1 // pred_fallthru
      _
    // Predicated region
    $region6: #{encoder_forward.1} parent=1 // pred_check
      _
    $region7: #{encoder_forward.1} parent=1 // pred_check_branch
      %29 = sbr.rel (0) target = $region9
    $region8: #{encoder_forward.1} parent=1 // pred_region
      %31 = vsyncadd [#allocation5], 0
      %s32 = sshll.u32 %s1, 4
      %s33 = int_to_ptr.hbm [resolvable:$true] %s32
      %s34 = sshll.u32 [#allocation4], 4
      %s35 = int_to_ptr.vmem [resolvable:$true] %s34
      %40 = dma.hbm_to_vmem [thread:$0]  %s33, 128, %s35, [#allocation5], 64, 64, 4
    $region9: #{encoder_forward.1} parent=1 // pred_fallthru
      _
    // Predicated region
    $region10: #{encoder_forward.1} parent=1 // pred_check
      _
    $region11: #{encoder_forward.1} parent=1 // pred_check_branch
      %42 = sbr.rel (0) target = $region13
    $region12: #{encoder_forward.1} parent=1 // pred_region
      %44 = vsyncadd [#allocation5], 0
      %s46 = sshll.u32 %s2, 4
      %s47 = int_to_ptr.hbm [resolvable:$true] %s46
      %s48 = sshll.u32 [#allocation6], 4
      %s49 = int_to_ptr.vmem [resolvable:$true] %s48
      %51 = dma.hbm_to_vmem [thread:$0]  %s47, 16, %s49, [#allocation5]
    $region13: #{encoder_forward.1} parent=1 // pred_fallthru
      _
    // Predicated region
    $region14: #{encoder_forward.1} parent=1 // pred_check
      _
    $region15: #{encoder_forward.1} parent=1 // pred_check_branch
      %53 = sbr.rel (0) target = $region17
    $region16: #{encoder_forward.1} parent=1 // pred_region
      %55 = vsyncadd [#allocation8], 0
      %s56 = sshll.u32 %s3, 4
      %s57 = int_to_ptr.hbm [resolvable:$true] %s56
      %s58 = sshll.u32 [#allocation7], 4
      %s59 = int_to_ptr.vmem [resolvable:$true] %s58
      %64 = dma.hbm_to_vmem [thread:$0]  %s57, 1024, %s59, [#allocation8], 64, 64, 4
    $region17: #{encoder_forward.1} parent=1 // pred_fallthru
      _
    // Predicated region
    $region18: #{encoder_forward.1} parent=1 // pred_check
      _
    $region19: #{encoder_forward.1} parent=1 // pred_check_branch
      %66 = sbr.rel (0) target = $region21
    $region20: #{encoder_forward.1} parent=1 // pred_region
      _
    $region21: #{encoder_forward.1} parent=1 // pred_fallthru
      _
    // Predicated region
    $region22: #{encoder_forward.1} parent=1 // pred_check
      _
    $region23: #{encoder_forward.1} parent=1 // pred_check_branch
      %68 = sbr.rel (0) target = $region25
    $region24: #{encoder_forward.1} parent=1 // pred_region
      %70 = vsyncadd [#allocation8], 0
      %s71 = sshll.u32 %s5, 4
      %s72 = int_to_ptr.hbm [resolvable:$true] %s71
      %s73 = sshll.u32 [#allocation9], 4
      %s74 = int_to_ptr.vmem [resolvable:$true] %s73
      %79 = dma.hbm_to_vmem [thread:$0]  %s72, 1024, %s74, [#allocation8], 64, 64, 4
    $region25: #{encoder_forward.1} parent=1 // pred_fallthru
      _
    // Predicated region
    $region26: #{encoder_forward.1} parent=1 // pred_check
      _
    $region27: #{encoder_forward.1} parent=1 // pred_check_branch
      %81 = sbr.rel (0) target = $region29
    $region28: #{encoder_forward.1} parent=1 // pred_region
      _
    $region29: #{encoder_forward.1} parent=1 // pred_fallthru
      _
    // Predicated region
    $region30: #{encoder_forward.1} parent=1 // pred_check
      _
    $region31: #{encoder_forward.1} parent=1 // pred_check_branch
      %83 = sbr.rel (0) target = $region33
    $region32: #{encoder_forward.1} parent=1 // pred_region
      %85 = dma.done [#allocation3], 256
    $region33: #{encoder_forward.1} parent=1 // pred_fallthru
      _
    // Predicated region
    $region34: #{encoder_forward.1} parent=1 // pred_check
      _
    $region35: #{encoder_forward.1} parent=1 // pred_check_branch
      %87 = sbr.rel (0) target = $region37
    $region36: #{encoder_forward.1} parent=1 // pred_region
      %89 = dma.done [#allocation5], 128
    $region37: #{encoder_forward.1} parent=1 // pred_fallthru
      _
    // Predicated region
    $region38: #{encoder_forward.1} parent=1 // pred_check
      _
    $region39: #{encoder_forward.1} parent=1 // pred_check_branch
      %91 = sbr.rel (0) target = $region41
    $region40: #{encoder_forward.1} parent=1 // pred_region
      %93 = dma.done [#allocation5], 16
    $region41: #{encoder_forward.1} parent=1 // pred_fallthru
      _
    // Predicated region
    $region42: #{encoder_forward.1} parent=1 // pred_check
      _
    $region43: #{encoder_forward.1} parent=1 // pred_check_branch
      %95 = sbr.rel (0) target = $region45
    $region44: #{encoder_forward.1} parent=1 // pred_region
      %97 = dma.done [#allocation8], 1024
    $region45: #{encoder_forward.1} parent=1 // pred_fallthru
      _
    // Predicated region
    $region46: #{encoder_forward.1} parent=1 // pred_check
      _
    $region47: #{encoder_forward.1} parent=1 // pred_check_branch
      %99 = sbr.rel (0) target = $region49
    $region48: #{encoder_forward.1} parent=1 // pred_region
      %101 = dma.done [#allocation8], 1024
    $region49: #{encoder_forward.1} parent=1 // pred_fallthru
      _
    %v103 = vld [vmem:[#allocation2] sm:$0xff]
    %v104 = vld [vmem:[#allocation2 + $0x8] sm:$0xff]
    %v105 = vpack.c.bf16 %v104, %v103
    %v106 = vld [vmem:[#allocation4] sm:$0xf]
    %v107 = vld [vmem:[#allocation4 + $0x4] sm:$0xf]
    %v108 = vld [vmem:[#allocation6] sm:$0x1]
    %v110 = vperm.slane %v108, 0
    %v114 = vunpack.c.l.b16 %v106
    %v115 = vunpack.c.l.b16 %v107
    %v116 = vpack.c.b16 %v115, %v114
    %vm118 = vcmask 130048
    %v120 = vsel %vm118, %v105, 0
    %122 = vmatpush.bf16.msra.mxu0 0
    %123 = vmatpush.bf16.msra.mxu0 0
    %124 = vmatpush.bf16.msra.mxu0 0
    %125 = vmatpush.bf16.msra.mxu0 0
    %126 = vmatpush.bf16.msra.mxu0 0
    %127 = vmatpush.bf16.msra.mxu0 0
    %128 = vmatpush.bf16.msra.mxu0 0
    %129 = vmatpush.bf16.msra.mxu0 %v116
    %130 = vmatmul.bf16.gmra.mxu0 %v120
    %v131 = vpop.f32.mrf.mxu0
    %v132 = vadd.f32 %v110, %v131
    %v133 = vpop.f32.mrf.mxu0
    %v134 = vadd.f32 %v110, %v133
    %135 = vdwg.mxu0
    %v136 = vpack.c.bf16 %v134, %v132
    %v137 = vld [vmem:[#allocation7] sm:$0xf]
    %v138 = vld [vmem:[#allocation7 + $0x4] sm:$0xf]
    %v139 = vld [vmem:[#allocation7 + $0x8] sm:$0xf]
    %v140 = vld [vmem:[#allocation7 + $0xc] sm:$0xf]
    %v141 = vld [vmem:[#allocation7 + $0x10] sm:$0xf]
    %v142 = vld [vmem:[#allocation7 + $0x14] sm:$0xf]
    %v143 = vld [vmem:[#allocation7 + $0x18] sm:$0xf]
    %v144 = vld [vmem:[#allocation7 + $0x1c] sm:$0xf]
    %v145 = vld [vmem:[#allocation7 + $0x20] sm:$0xf]
    %v146 = vld [vmem:[#allocation7 + $0x24] sm:$0xf]
    %v147 = vld [vmem:[#allocation7 + $0x28] sm:$0xf]
    %v148 = vld [vmem:[#allocation7 + $0x2c] sm:$0xf]
    %v149 = vld [vmem:[#allocation7 + $0x30] sm:$0xf]
    %v150 = vld [vmem:[#allocation7 + $0x34] sm:$0xf]
    %v151 = vld [vmem:[#allocation7 + $0x38] sm:$0xf]
    %v152 = vld [vmem:[#allocation7 + $0x3c] sm:$0xf]
    %v153 = vld [vmem:[%s4] sm:$0x1]
    %v155 = vperm.slane %v153, 0
    %v173 = vunpack.c.l.b16 %v137
    %v174 = vunpack.c.l.b16 %v138
    %v175 = vunpack.c.l.b16 %v139
    %v176 = vunpack.c.l.b16 %v140
    %v177 = vunpack.c.l.b16 %v141
    %v178 = vunpack.c.l.b16 %v142
    %v179 = vunpack.c.l.b16 %v143
    %v180 = vunpack.c.l.b16 %v144
    %v181 = vunpack.c.l.b16 %v145
    %v182 = vunpack.c.l.b16 %v146
    %v183 = vunpack.c.l.b16 %v147
    %v184 = vunpack.c.l.b16 %v148
    %v185 = vunpack.c.l.b16 %v149
    %v186 = vunpack.c.l.b16 %v150
    %v187 = vunpack.c.l.b16 %v151
    %v188 = vunpack.c.l.b16 %v152
    %v189 = vpack.c.b16 %v174, %v173
    %v190 = vpack.c.b16 %v176, %v175
    %v191 = vpack.c.b16 %v178, %v177
    %v192 = vpack.c.b16 %v180, %v179
    %v193 = vpack.c.b16 %v182, %v181
    %v194 = vpack.c.b16 %v184, %v183
    %v195 = vpack.c.b16 %v186, %v185
    %v196 = vpack.c.b16 %v188, %v187
    %205 = vmatpush.bf16.msra.mxu0 %v196
    %206 = vmatpush.bf16.msra.mxu0 %v195
    %207 = vmatpush.bf16.msra.mxu0 %v194
    %208 = vmatpush.bf16.msra.mxu0 %v193
    %209 = vmatpush.bf16.msra.mxu0 %v192
    %210 = vmatpush.bf16.msra.mxu0 %v191
    %211 = vmatpush.bf16.msra.mxu0 %v190
    %212 = vmatpush.bf16.msra.mxu0 %v189
    %213 = vmatmul.bf16.gmra.mxu0 %v136
    %v214 = vpop.f32.mrf.mxu0
    %v215 = vadd.f32 %v155, %v214
    %v216 = vpop.f32.mrf.mxu0
    %v217 = vadd.f32 %v155, %v216
    %218 = vdwg.mxu0
    %v219 = vmax.f32 %v215, 0.0
    %v220 = vmax.f32 %v217, 0.0
    %v221 = vpack.c.bf16 %v220, %v219
    %v222 = vld [vmem:[#allocation9] sm:$0xf]
    %v223 = vld [vmem:[#allocation9 + $0x4] sm:$0xf]
    %v224 = vld [vmem:[#allocation9 + $0x8] sm:$0xf]
    %v225 = vld [vmem:[#allocation9 + $0xc] sm:$0xf]
    %v226 = vld [vmem:[#allocation9 + $0x10] sm:$0xf]
    %v227 = vld [vmem:[#allocation9 + $0x14] sm:$0xf]
    %v228 = vld [vmem:[#allocation9 + $0x18] sm:$0xf]
    %v229 = vld [vmem:[#allocation9 + $0x1c] sm:$0xf]
    %v230 = vld [vmem:[#allocation9 + $0x20] sm:$0xf]
    %v231 = vld [vmem:[#allocation9 + $0x24] sm:$0xf]
    %v232 = vld [vmem:[#allocation9 + $0x28] sm:$0xf]
    %v233 = vld [vmem:[#allocation9 + $0x2c] sm:$0xf]
    %v234 = vld [vmem:[#allocation9 + $0x30] sm:$0xf]
    %v235 = vld [vmem:[#allocation9 + $0x34] sm:$0xf]
    %v236 = vld [vmem:[#allocation9 + $0x38] sm:$0xf]
    %v237 = vld [vmem:[#allocation9 + $0x3c] sm:$0xf]
    %v238 = vld [vmem:[%s6] sm:$0x1]
    %v240 = vperm.slane %v238, 0
    %v258 = vunpack.c.l.b16 %v222
    %v259 = vunpack.c.l.b16 %v223
    %v260 = vunpack.c.l.b16 %v224
    %v261 = vunpack.c.l.b16 %v225
    %v262 = vunpack.c.l.b16 %v226
    %v263 = vunpack.c.l.b16 %v227
    %v264 = vunpack.c.l.b16 %v228
    %v265 = vunpack.c.l.b16 %v229
    %v266 = vunpack.c.l.b16 %v230
    %v267 = vunpack.c.l.b16 %v231
    %v268 = vunpack.c.l.b16 %v232
    %v269 = vunpack.c.l.b16 %v233
    %v270 = vunpack.c.l.b16 %v234
    %v271 = vunpack.c.l.b16 %v235
    %v272 = vunpack.c.l.b16 %v236
    %v273 = vunpack.c.l.b16 %v237
    %v274 = vpack.c.b16 %v259, %v258
    %v275 = vpack.c.b16 %v261, %v260
    %v276 = vpack.c.b16 %v263, %v262
    %v277 = vpack.c.b16 %v265, %v264
    %v278 = vpack.c.b16 %v267, %v266
    %v279 = vpack.c.b16 %v269, %v268
    %v280 = vpack.c.b16 %v271, %v270
    %v281 = vpack.c.b16 %v273, %v272
    %290 = vmatpush.bf16.msra.mxu0 %v281
    %291 = vmatpush.bf16.msra.mxu0 %v280
    %292 = vmatpush.bf16.msra.mxu0 %v279
    %293 = vmatpush.bf16.msra.mxu0 %v278
    %294 = vmatpush.bf16.msra.mxu0 %v277
    %295 = vmatpush.bf16.msra.mxu0 %v276
    %296 = vmatpush.bf16.msra.mxu0 %v275
    %297 = vmatpush.bf16.msra.mxu0 %v274
    %298 = vmatmul.bf16.gmra.mxu0 %v221
    %v299 = vpop.f32.mrf.mxu0
    %v300 = vadd.f32 %v240, %v299
    %v301 = vpop.f32.mrf.mxu0
    %v302 = vadd.f32 %v240, %v301
    %303 = vdwg.mxu0
    %304 = vst [vmem:[%s7] sm:$0xff] %v300
    %305 = vst [vmem:[%s7 + $0x8] sm:$0xff] %v302
    // Predicated region
    $region50: #{encoder_forward.1} parent=1 // pred_check
      _
    $region51: #{encoder_forward.1} parent=1 // pred_check_branch
      %307 = sbr.rel (0) target = $region53
    $region52: #{encoder_forward.1} parent=1 // pred_region
      _
    $region53: #{encoder_forward.1} parent=1 // pred_fallthru
      _
    // Predicated region
    $region54: #{encoder_forward.1} parent=1 // pred_check
      _
    $region55: #{encoder_forward.1} parent=1 // pred_check_branch
      %309 = sbr.rel (0) target = $region57
    $region56: #{encoder_forward.1} parent=1 // pred_region
      _
    $region57: #{encoder_forward.1} parent=1 // pred_fallthru
      _
    %310 = vsyncpa [#allocation3], 1
    %311 = vsyncpa [#allocation5], 1
    %312 = vsyncpa [#allocation8], 1

// kernel: encoder_forward.1
$region0: #{encoder_forward.1}
  #allocation0 [shape = 'u32[]', space=smem, size = 0x4, offset = 0x4, fixed_abs, tag = 'smem constant byte address 0x4 - core index']
  #allocation1 [shape = 'u32[72,128]{1,0:T(1,128)}', space=vmem, size = 0x9000, scoped, tag = 'internal scratch']
  %s0 = inlined_call_operand.hbm [shape: f32[16,16], index: 0, kind: input, shape index: {}]
  %s1 = inlined_call_operand.hbm [shape: bf16[16,128], index: 1, kind: input, shape index: {}]
  %s2 = inlined_call_operand.hbm [shape: f32[1,128], index: 2, kind: input, shape index: {}]
  %s3 = inlined_call_operand.hbm [shape: bf16[128,128], index: 3, kind: input, shape index: {}]
  %s4 = inlined_call_operand.vmem [shape: f32[1,128], index: 4, kind: input, shape index: {}]
  %s5 = inlined_call_operand.hbm [shape: bf16[128,128], index: 5, kind: input, shape index: {}]
  %s6 = inlined_call_operand.vmem [shape: f32[1,128], index: 6, kind: input, shape index: {}]
  %s7 = inlined_call_operand.vmem [shape: f32[16,128], index: 7, kind: output, shape index: {}]
  %s8 = sld [smem:[#allocation0]]
  $region58: #{encoder_forward.1} parent=0
    _
  %s10 = ssub.s32 1, %s8
  %s11 = scalar_select 0, %s10, %s8
  $region1: #{encoder_forward.1} parent=0
    #allocation2 [shape = 'u8[8192]{0}', space=vmem, size = 0x2000, scoped, tag = 'input window, operand 0, single buffered']
    #allocation3 [shape = 's32[1]{0}', space=sflag, size = 0x4, scoped, tag = 'scoped memory for encoder_forward.1']
    #allocation4 [shape = 'u8[4096]{0}', space=vmem, size = 0x1000, scoped, tag = 'input window, operand 1, single buffered']
    #allocation5 [shape = 's32[1]{0}', space=sflag, size = 0x4, scoped, tag = 'scoped memory for encoder_forward.1']
    #allocation6 [shape = 'u8[512]{0}', space=vmem, size = 0x400, scoped, tag = 'input window, operand 2, single buffered']
    #allocation7 [shape = 'u8[32768]{0}', space=vmem, size = 0x8000, scoped, tag = 'input window, operand 3, single buffered']
    #allocation8 [shape = 's32[1]{0}', space=sflag, size = 0x4, scoped, tag = 'scoped memory for encoder_forward.1']
    #allocation9 [shape = 'u8[32768]{0}', space=vmem, size = 0x8000, scoped, tag = 'input window, operand 5, single buffered']
    %12 = vsyncpa [#allocation3], 0
    %13 = vsyncpa [#allocation5], 0
    %14 = vsyncpa [#allocation8], 0
    // Predicated region
    $region2: #{encoder_forward.1} parent=1 // pred_check
      _
    $region3: #{encoder_forward.1} parent=1 // pred_check_branch
      %16 = sbr.rel (0) target = $region5
    $region4: #{encoder_forward.1} parent=1 // pred_region
      %18 = vsyncadd [#allocation3], 0
      %s19 = sshll.u32 %s0, 4
      %s20 = int_to_ptr.hbm [resolvable:$true] %s19
      %s21 = sshll.u32 [#allocation2], 4
      %s22 = int_to_ptr.vmem [resolvable:$true] %s21
      %27 = dma.hbm_to_vmem [thread:$0]  %s20, 256, %s22, [#allocation3], 128, 128, 8
    $region5: #{encoder_forward.1} parent=1 // pred_fallthru
      _
    // Predicated region
    $region6: #{encoder_forward.1} parent=1 // pred_check
      _
    $region7: #{encoder_forward.1} parent=1 // pred_check_branch
      %29 = sbr.rel (0) target = $region9
    $region8: #{encoder_forward.1} parent=1 // pred_region
      %31 = vsyncadd [#allocation5], 0
      %s32 = sshll.u32 %s1, 4
      %s33 = int_to_ptr.hbm [resolvable:$true] %s32
      %s34 = sshll.u32 [#allocation4], 4
      %s35 = int_to_ptr.vmem [resolvable:$true] %s34
      %40 = dma.hbm_to_vmem [thread:$0]  %s33, 128, %s35, [#allocation5], 64, 64, 4
    $region9: #{encoder_forward.1} parent=1 // pred_fallthru
      _
    // Predicated region
    $region10: #{encoder_forward.1} parent=1 // pred_check
      _
    $region11: #{encoder_forward.1} parent=1 // pred_check_branch
      %42 = sbr.rel (0) target = $region13
    $region12: #{encoder_forward.1} parent=1 // pred_region
      %44 = vsyncadd [#allocation5], 0
      %s46 = sshll.u32 %s2, 4
      %s47 = int_to_ptr.hbm [resolvable:$true] %s46
      %s48 = sshll.u32 [#allocation6], 4
      %s49 = int_to_ptr.vmem [resolvable:$true] %s48
      %51 = dma.hbm_to_vmem [thread:$0]  %s47, 16, %s49, [#allocation5]
    $region13: #{encoder_forward.1} parent=1 // pred_fallthru
      _
    // Predicated region
    $region14: #{encoder_forward.1} parent=1 // pred_check
      _
    $region15: #{encoder_forward.1} parent=1 // pred_check_branch
      %53 = sbr.rel (0) target = $region17
    $region16: #{encoder_forward.1} parent=1 // pred_region
      %55 = vsyncadd [#allocation8], 0
      %s56 = sshll.u32 %s3, 4
      %s57 = int_to_ptr.hbm [resolvable:$true] %s56
      %s58 = sshll.u32 [#allocation7], 4
      %s59 = int_to_ptr.vmem [resolvable:$true] %s58
      %64 = dma.hbm_to_vmem [thread:$0]  %s57, 1024, %s59, [#allocation8], 64, 64, 4
    $region17: #{encoder_forward.1} parent=1 // pred_fallthru
      _
    // Predicated region
    $region18: #{encoder_forward.1} parent=1 // pred_check
      _
    $region19: #{encoder_forward.1} parent=1 // pred_check_branch
      %66 = sbr.rel (0) target = $region21
    $region20: #{encoder_forward.1} parent=1 // pred_region
      _
    $region21: #{encoder_forward.1} parent=1 // pred_fallthru
      _
    // Predicated region
    $region22: #{encoder_forward.1} parent=1 // pred_check
      _
    $region23: #{encoder_forward.1} parent=1 // pred_check_branch
      %68 = sbr.rel (0) target = $region25
    $region24: #{encoder_forward.1} parent=1 // pred_region
      %70 = vsyncadd [#allocation8], 0
      %s71 = sshll.u32 %s5, 4
      %s72 = int_to_ptr.hbm [resolvable:$true] %s71
      %s73 = sshll.u32 [#allocation9], 4
      %s74 = int_to_ptr.vmem [resolvable:$true] %s73
      %79 = dma.hbm_to_vmem [thread:$0]  %s72, 1024, %s74, [#allocation8], 64, 64, 4
    $region25: #{encoder_forward.1} parent=1 // pred_fallthru
      _
    // Predicated region
    $region26: #{encoder_forward.1} parent=1 // pred_check
      _
    $region27: #{encoder_forward.1} parent=1 // pred_check_branch
      %81 = sbr.rel (0) target = $region29
    $region28: #{encoder_forward.1} parent=1 // pred_region
      _
    $region29: #{encoder_forward.1} parent=1 // pred_fallthru
      _
    // Predicated region
    $region30: #{encoder_forward.1} parent=1 // pred_check
      _
    $region31: #{encoder_forward.1} parent=1 // pred_check_branch
      %83 = sbr.rel (0) target = $region33
    $region32: #{encoder_forward.1} parent=1 // pred_region
      %85 = dma.done [#allocation3], 256
    $region33: #{encoder_forward.1} parent=1 // pred_fallthru
      _
    // Predicated region
    $region34: #{encoder_forward.1} parent=1 // pred_check
      _
    $region35: #{encoder_forward.1} parent=1 // pred_check_branch
      %87 = sbr.rel (0) target = $region37
    $region36: #{encoder_forward.1} parent=1 // pred_region
      %89 = dma.done [#allocation5], 128
    $region37: #{encoder_forward.1} parent=1 // pred_fallthru
      _
    // Predicated region
    $region38: #{encoder_forward.1} parent=1 // pred_check
      _
    $region39: #{encoder_forward.1} parent=1 // pred_check_branch
      %91 = sbr.rel (0) target = $region41
    $region40: #{encoder_forward.1} parent=1 // pred_region
      %93 = dma.done [#allocation5], 16
    $region41: #{encoder_forward.1} parent=1 // pred_fallthru
      _
    // Predicated region
    $region42: #{encoder_forward.1} parent=1 // pred_check
      _
    $region43: #{encoder_forward.1} parent=1 // pred_check_branch
      %95 = sbr.rel (0) target = $region45
    $region44: #{encoder_forward.1} parent=1 // pred_region
      %97 = dma.done [#allocation8], 1024
    $region45: #{encoder_forward.1} parent=1 // pred_fallthru
      _
    // Predicated region
    $region46: #{encoder_forward.1} parent=1 // pred_check
      _
    $region47: #{encoder_forward.1} parent=1 // pred_check_branch
      %99 = sbr.rel (0) target = $region49
    $region48: #{encoder_forward.1} parent=1 // pred_region
      %101 = dma.done [#allocation8], 1024
    $region49: #{encoder_forward.1} parent=1 // pred_fallthru
      _
    %v103 = vld [vmem:[#allocation2] sm:$0xff]
    %v104 = vld [vmem:[#allocation2 + $0x8] sm:$0xff]
    %v105 = vpack.c.bf16 %v104, %v103
    %v106 = vld [vmem:[#allocation4] sm:$0xf]
    %v107 = vld [vmem:[#allocation4 + $0x4] sm:$0xf]
    %v108 = vld [vmem:[#allocation6] sm:$0x1]
    %v110 = vperm.slane %v108, 0
    %v114 = vunpack.c.l.b16 %v106
    %v115 = vunpack.c.l.b16 %v107
    %v116 = vpack.c.b16 %v115, %v114
    %vm118 = vcmask 130048
    %v120 = vsel %vm118, %v105, 0
    %122 = vmatpush.bf16.msra.mxu0 0
    %123 = vmatpush.bf16.msra.mxu0 0
    %124 = vmatpush.bf16.msra.mxu0 0
    %125 = vmatpush.bf16.msra.mxu0 0
    %126 = vmatpush.bf16.msra.mxu0 0
    %127 = vmatpush.bf16.msra.mxu0 0
    %128 = vmatpush.bf16.msra.mxu0 0
    %129 = vmatpush.bf16.msra.mxu0 %v116
    %130 = vmatmul.bf16.gmra.mxu0 %v120
    %v131 = vpop.f32.mrf.mxu0
    %v132 = vadd.f32 %v110, %v131
    %v133 = vpop.f32.mrf.mxu0
    %v134 = vadd.f32 %v110, %v133
    %135 = vdwg.mxu0
    %v136 = vpack.c.bf16 %v134, %v132
    %v137 = vld [vmem:[#allocation7] sm:$0xf]
    %v138 = vld [vmem:[#allocation7 + $0x4] sm:$0xf]
    %v139 = vld [vmem:[#allocation7 + $0x8] sm:$0xf]
    %v140 = vld [vmem:[#allocation7 + $0xc] sm:$0xf]
    %v141 = vld [vmem:[#allocation7 + $0x10] sm:$0xf]
    %v142 = vld [vmem:[#allocation7 + $0x14] sm:$0xf]
    %v143 = vld [vmem:[#allocation7 + $0x18] sm:$0xf]
    %v144 = vld [vmem:[#allocation7 + $0x1c] sm:$0xf]
    %v145 = vld [vmem:[#allocation7 + $0x20] sm:$0xf]
    %v146 = vld [vmem:[#allocation7 + $0x24] sm:$0xf]
    %v147 = vld [vmem:[#allocation7 + $0x28] sm:$0xf]
    %v148 = vld [vmem:[#allocation7 + $0x2c] sm:$0xf]
    %v149 = vld [vmem:[#allocation7 + $0x30] sm:$0xf]
    %v150 = vld [vmem:[#allocation7 + $0x34] sm:$0xf]
    %v151 = vld [vmem:[#allocation7 + $0x38] sm:$0xf]
    %v152 = vld [vmem:[#allocation7 + $0x3c] sm:$0xf]
    %v153 = vld [vmem:[%s4] sm:$0x1]
    %v155 = vperm.slane %v153, 0
    %v173 = vunpack.c.l.b16 %v137
    %v174 = vunpack.c.l.b16 %v138
    %v175 = vunpack.c.l.b16 %v139
    %v176 = vunpack.c.l.b16 %v140
    %v177 = vunpack.c.l.b16 %v141
    %v178 = vunpack.c.l.b16 %v142
    %v179 = vunpack.c.l.b16 %v143
    %v180 = vunpack.c.l.b16 %v144
    %v181 = vunpack.c.l.b16 %v145
    %v182 = vunpack.c.l.b16 %v146
    %v183 = vunpack.c.l.b16 %v147
    %v184 = vunpack.c.l.b16 %v148
    %v185 = vunpack.c.l.b16 %v149
    %v186 = vunpack.c.l.b16 %v150
    %v187 = vunpack.c.l.b16 %v151
    %v188 = vunpack.c.l.b16 %v152
    %v189 = vpack.c.b16 %v174, %v173
    %v190 = vpack.c.b16 %v176, %v175
    %v191 = vpack.c.b16 %v178, %v177
    %v192 = vpack.c.b16 %v180, %v179
    %v193 = vpack.c.b16 %v182, %v181
    %v194 = vpack.c.b16 %v184, %v183
    %v195 = vpack.c.b16 %v186, %v185
    %v196 = vpack.c.b16 %v188, %v187
    %205 = vmatpush.bf16.msra.mxu0 %v196
    %206 = vmatpush.bf16.msra.mxu0 %v195
    %207 = vmatpush.bf16.msra.mxu0 %v194
    %208 = vmatpush.bf16.msra.mxu0 %v193
    %209 = vmatpush.bf16.msra.mxu0 %v192
    %210 = vmatpush.bf16.msra.mxu0 %v191
    %211 = vmatpush.bf16.msra.mxu0 %v190
    %212 = vmatpush.bf16.msra.mxu0 %v189
    %213 = vmatmul.bf16.gmra.mxu0 %v136
    %v214 = vpop.f32.mrf.mxu0
    %v215 = vadd.f32 %v155, %v214
    %v216 = vpop.f32.mrf.mxu0
    %v217 = vadd.f32 %v155, %v216
    %218 = vdwg.mxu0
    %v219 = vmax.f32 %v215, 0.0
    %v220 = vmax.f32 %v217, 0.0
    %v221 = vpack.c.bf16 %v220, %v219
    %v222 = vld [vmem:[#allocation9] sm:$0xf]
    %v223 = vld [vmem:[#allocation9 + $0x4] sm:$0xf]
    %v224 = vld [vmem:[#allocation9 + $0x8] sm:$0xf]
    %v225 = vld [vmem:[#allocation9 + $0xc] sm:$0xf]
    %v226 = vld [vmem:[#allocation9 + $0x10] sm:$0xf]
    %v227 = vld [vmem:[#allocation9 + $0x14] sm:$0xf]
    %v228 = vld [vmem:[#allocation9 + $0x18] sm:$0xf]
    %v229 = vld [vmem:[#allocation9 + $0x1c] sm:$0xf]
    %v230 = vld [vmem:[#allocation9 + $0x20] sm:$0xf]
    %v231 = vld [vmem:[#allocation9 + $0x24] sm:$0xf]
    %v232 = vld [vmem:[#allocation9 + $0x28] sm:$0xf]
    %v233 = vld [vmem:[#allocation9 + $0x2c] sm:$0xf]
    %v234 = vld [vmem:[#allocation9 + $0x30] sm:$0xf]
    %v235 = vld [vmem:[#allocation9 + $0x34] sm:$0xf]
    %v236 = vld [vmem:[#allocation9 + $0x38] sm:$0xf]
    %v237 = vld [vmem:[#allocation9 + $0x3c] sm:$0xf]
    %v238 = vld [vmem:[%s6] sm:$0x1]
    %v240 = vperm.slane %v238, 0
    %v258 = vunpack.c.l.b16 %v222
    %v259 = vunpack.c.l.b16 %v223
    %v260 = vunpack.c.l.b16 %v224
    %v261 = vunpack.c.l.b16 %v225
    %v262 = vunpack.c.l.b16 %v226
    %v263 = vunpack.c.l.b16 %v227
    %v264 = vunpack.c.l.b16 %v228
    %v265 = vunpack.c.l.b16 %v229
    %v266 = vunpack.c.l.b16 %v230
    %v267 = vunpack.c.l.b16 %v231
    %v268 = vunpack.c.l.b16 %v232
    %v269 = vunpack.c.l.b16 %v233
    %v270 = vunpack.c.l.b16 %v234
    %v271 = vunpack.c.l.b16 %v235
    %v272 = vunpack.c.l.b16 %v236
    %v273 = vunpack.c.l.b16 %v237
    %v274 = vpack.c.b16 %v259, %v258
    %v275 = vpack.c.b16 %v261, %v260
    %v276 = vpack.c.b16 %v263, %v262
    %v277 = vpack.c.b16 %v265, %v264
    %v278 = vpack.c.b16 %v267, %v266
    %v279 = vpack.c.b16 %v269, %v268
    %v280 = vpack.c.b16 %v271, %v270
    %v281 = vpack.c.b16 %v273, %v272
    %290 = vmatpush.bf16.msra.mxu0 %v281
    %291 = vmatpush.bf16.msra.mxu0 %v280
    %292 = vmatpush.bf16.msra.mxu0 %v279
    %293 = vmatpush.bf16.msra.mxu0 %v278
    %294 = vmatpush.bf16.msra.mxu0 %v277
    %295 = vmatpush.bf16.msra.mxu0 %v276
    %296 = vmatpush.bf16.msra.mxu0 %v275
    %297 = vmatpush.bf16.msra.mxu0 %v274
    %298 = vmatmul.bf16.gmra.mxu0 %v221
    %v299 = vpop.f32.mrf.mxu0
    %v300 = vadd.f32 %v240, %v299
    %v301 = vpop.f32.mrf.mxu0
    %v302 = vadd.f32 %v240, %v301
    %303 = vdwg.mxu0
    %304 = vst [vmem:[%s7] sm:$0xff] %v300
    %305 = vst [vmem:[%s7 + $0x8] sm:$0xff] %v302
    // Predicated region
    $region50: #{encoder_forward.1} parent=1 // pred_check
      _
    $region51: #{encoder_forward.1} parent=1 // pred_check_branch
      %307 = sbr.rel (0) target = $region53
    $region52: #{encoder_forward.1} parent=1 // pred_region
      _
    $region53: #{encoder_forward.1} parent=1 // pred_fallthru
      _
    // Predicated region
    $region54: #{encoder_forward.1} parent=1 // pred_check
      _
    $region55: #{encoder_forward.1} parent=1 // pred_check_branch
      %309 = sbr.rel (0) target = $region57
    $region56: #{encoder_forward.1} parent=1 // pred_region
      _
    $region57: #{encoder_forward.1} parent=1 // pred_fallthru
      _
    %310 = vsyncpa [#allocation3], 1
    %311 = vsyncpa [#allocation5], 1
    %312 = vsyncpa [#allocation8], 1

</llo_original>
